<compile_context>
chip_gen: v7x
topology: tpu7x:2x2x1
jax: 0.10.0
libtpu: 0.0.40
codegen_flags: <defaults>
</compile_context>

<pallas_src>
import math

import jax
import jax.numpy as jnp
from jax.experimental import pallas as pl
from jax.experimental.pallas import tpu as pltpu


def _ffn_kernel(x_ref, w1_ref, b1_ref, w2_ref, b2_ref, o_ref, acc_ref):
    h_idx = pl.program_id(1)

    @pl.when(h_idx == 0)
    def _():
        acc_ref[...] = jnp.zeros_like(acc_ref)

    # First matmul: native-dtype MXU inputs, f32 accumulation.
    h = jnp.dot(x_ref[...], w1_ref[...], preferred_element_type=jnp.float32)
    h = h + b1_ref[...].astype(jnp.float32)

    # Exact (erf-based) GELU in f32, matching torch.nn.GELU() default.
    inv_sqrt2 = jnp.float32(0.7071067811865476)
    h = jnp.float32(0.5) * h * (jnp.float32(1.0) + jax.lax.erf(h * inv_sqrt2))

    # Second matmul: accumulate this hidden-block's contribution.
    acc_ref[...] += jnp.dot(
        h.astype(w2_ref.dtype), w2_ref[...], preferred_element_type=jnp.float32
    )

    @pl.when(h_idx == pl.num_programs(1) - 1)
    def _():
        o_ref[...] = (acc_ref[...] + b2_ref[...].astype(jnp.float32)).astype(
            o_ref.dtype
        )


def _round_up(x, m):
    return ((x + m - 1) // m) * m


def _pick_tile_h(hidden, tile_h):
    """Largest multiple-of-128 divisor of `hidden` not exceeding tile_h.

    The hidden axis is a reduction axis, so its tiles must not be ragged
    (out-of-bounds reads would pollute the accumulator)."""
    if hidden <= tile_h:
        return hidden
    t = tile_h - (tile_h % 128)
    while t >= 128:
        if hidden % t == 0:
            return t
        t -= 128
    return hidden  # fallback: keep full hidden resident


def feedforward_pallas(x, w1, b1, w2, b2, *, tile_m=256, tile_h=512):
    """x: (..., dim). Same semantics as torch FeedForward (Linear-GELU-Linear).

    w1: (dim, hidden), b1: (hidden,), w2: (hidden, dim), b2: (dim,)
    (weights stored transposed relative to torch's nn.Linear.weight)."""
    dim = x.shape[-1]
    hidden = w1.shape[1]
    lead_shape = x.shape[:-1]
    M = math.prod(lead_shape)
    x2 = x.reshape(M, dim)

    assert tile_m % 8 == 0, "tile_m must be a multiple of 8 (f32 sublane)"
    tm = min(tile_m, _round_up(max(M, 1), 8))
    th = _pick_tile_h(hidden, tile_h)

    grid = (pl.cdiv(M, tm), hidden // th)

    b1_2d = b1.reshape(1, hidden)
    b2_2d = b2.reshape(1, dim)

    out = pl.pallas_call(
        _ffn_kernel,
        out_shape=jax.ShapeDtypeStruct((M, dim), x.dtype),
        grid_spec=pltpu.PrefetchScalarGridSpec(
            num_scalar_prefetch=0,
            grid=grid,
            in_specs=[
                pl.BlockSpec((tm, dim), lambda i, h: (i, 0)),      # x row-tile
                pl.BlockSpec((dim, th), lambda i, h: (0, h)),      # w1 H-block
                pl.BlockSpec((1, th), lambda i, h: (0, h)),        # b1 H-block
                pl.BlockSpec((th, dim), lambda i, h: (h, 0)),      # w2 H-block
                pl.BlockSpec((1, dim), lambda i, h: (0, 0)),       # b2
            ],
            out_specs=pl.BlockSpec((tm, dim), lambda i, h: (i, 0)),
            scratch_shapes=[pltpu.VMEM((tm, dim), jnp.float32)],
        ),
        compiler_params=pltpu.CompilerParams(
            dimension_semantics=("parallel", "arbitrary"),
        ),
    )(x2, w1, b1_2d, w2, b2_2d)

    return out.reshape(*lead_shape, dim)


def feedforward_ref(x, w1, b1, w2, b2):
    h = jnp.dot(x, w1) + b1
    h = 0.5 * h * (1.0 + jax.lax.erf(h / jnp.sqrt(2.0)))
    return jnp.dot(h, w2) + b2


if __name__ == "__main__":
    # Small but lane-dense shapes consistent with the module: (B, N, dim).
    batch, seq, dim, hidden = 2, 8, 128, 256

    key = jax.random.PRNGKey(0)
    kx, kw1, kb1, kw2, kb2 = jax.random.split(key, 5)

    x = jax.random.normal(kx, (batch, seq, dim), dtype=jnp.float32)

    # Deterministic nn.Linear-style init: U(-1/sqrt(fan_in), 1/sqrt(fan_in))
    lim1 = 1.0 / math.sqrt(dim)
    lim2 = 1.0 / math.sqrt(hidden)
    w1 = jax.random.uniform(kw1, (dim, hidden), jnp.float32, -lim1, lim1)
    b1 = jax.random.uniform(kb1, (hidden,), jnp.float32, -lim1, lim1)
    w2 = jax.random.uniform(kw2, (hidden, dim), jnp.float32, -lim2, lim2)
    b2 = jax.random.uniform(kb2, (dim,), jnp.float32, -lim2, lim2)

    y = feedforward_pallas(x, w1, b1, w2, b2, tile_m=256, tile_h=512)
    y = jax.block_until_ready(y)

    y_ref = feedforward_ref(x, w1, b1, w2, b2)
    assert y.shape == x.shape
    assert jnp.allclose(y, y_ref, atol=1e-4, rtol=1e-4), float(
        jnp.max(jnp.abs(y - y_ref))
    )

    print("KERNEL_OK")
</pallas_src>

<mosaic_0001>
module attributes {stable_mosaic.version = 11 : i64} {
  func.func @_ffn_kernel(%arg0: i32, %arg1: i32, %arg2: memref<16x128xf32, #tpu.memory_space<vmem>>, %arg3: memref<128x256xf32, #tpu.memory_space<vmem>>, %arg4: memref<1x256xf32, #tpu.memory_space<vmem>>, %arg5: memref<256x128xf32, #tpu.memory_space<vmem>>, %arg6: memref<1x128xf32, #tpu.memory_space<vmem>>, %arg7: memref<16x128xf32, #tpu.memory_space<vmem>>, %arg8: memref<16x128xf32, #tpu.memory_space<vmem>>) attributes {dimension_semantics = [#tpu.dimension_semantics<parallel>, #tpu.dimension_semantics<arbitrary>], iteration_bounds = array<i64: 1, 1>, scalar_prefetch = 0 : i64, scratch_operands = 1 : i64, tpu.core_type = #tpu.core_type<tc>, window_params = [{transform_indices = @transform_0, window_bounds = array<i64: 16, 128>}, {transform_indices = @transform_1, window_bounds = array<i64: 128, 256>}, {transform_indices = @transform_2, window_bounds = array<i64: 1, 256>}, {transform_indices = @transform_3, window_bounds = array<i64: 256, 128>}, {pipeline_mode = #tpu.pipeline_mode<synchronous>, transform_indices = @transform_4, window_bounds = array<i64: 1, 128>}, {transform_indices = @transform_5, window_bounds = array<i64: 16, 128>}]} {
    %c0_i32 = arith.constant 0 : i32
    %0 = arith.cmpi eq, %arg1, %c0_i32 : i32
    %1 = arith.extui %0 : i1 to i32
    %c0_i32_0 = arith.constant 0 : i32
    %2 = arith.cmpi ne, %1, %c0_i32_0 : i32
    scf.if %2 {
      %cst_18 = arith.constant 0.000000e+00 : f32
      %25 = vector.broadcast %cst_18 : f32 to vector<16x128xf32>
      %c0_19 = arith.constant 0 : index
      %c0_20 = arith.constant 0 : index
      %26 = vector.load %arg8[%c0_19, %c0_20] : memref<16x128xf32, #tpu.memory_space<vmem>>, vector<16x128xf32>
      tpu.vector_store %arg8[%c0_19, %c0_20], %25 {strides = array<i32>} : memref<16x128xf32, #tpu.memory_space<vmem>>, vector<16x128xf32>,
    } else {
    }
    %c0 = arith.constant 0 : index
    %c0_1 = arith.constant 0 : index
    %3 = vector.load %arg2[%c0, %c0_1] : memref<16x128xf32, #tpu.memory_space<vmem>>, vector<16x128xf32>
    %c0_2 = arith.constant 0 : index
    %c0_3 = arith.constant 0 : index
    %4 = vector.load %arg3[%c0_2, %c0_3] : memref<128x256xf32, #tpu.memory_space<vmem>>, vector<128x256xf32>
    %cst = arith.constant dense<0.000000e+00> : vector<16x256xf32>
    %5 = tpu.matmul %3, %4, %cst {dimension_numbers = #tpu.dot_dimension_numbers<[1], [0], [0], [1], [0, 0, 1, 1], [], []>} : vector<16x128xf32>, vector<128x256xf32>, vector<16x256xf32> -> vector<16x256xf32>
    %c0_4 = arith.constant 0 : index
    %c0_5 = arith.constant 0 : index
    %6 = vector.load %arg4[%c0_4, %c0_5] : memref<1x256xf32, #tpu.memory_space<vmem>>, vector<1x256xf32>
    %7 = vector.broadcast %6 : vector<1x256xf32> to vector<16x256xf32>
    %8 = arith.addf %5, %7 : vector<16x256xf32>
    %cst_6 = arith.constant 5.000000e-01 : f32
    %9 = vector.broadcast %cst_6 : f32 to vector<16x256xf32>
    %10 = arith.mulf %9, %8 : vector<16x256xf32>
    %cst_7 = arith.constant 0.707106769 : f32
    %11 = vector.broadcast %cst_7 : f32 to vector<16x256xf32>
    %12 = arith.mulf %8, %11 : vector<16x256xf32>
    %13 = math.erf %12 : vector<16x256xf32>
    %cst_8 = arith.constant 1.000000e+00 : f32
    %14 = vector.broadcast %cst_8 : f32 to vector<16x256xf32>
    %15 = arith.addf %14, %13 : vector<16x256xf32>
    %16 = arith.mulf %10, %15 : vector<16x256xf32>
    %c0_9 = arith.constant 0 : index
    %c0_10 = arith.constant 0 : index
    %17 = vector.load %arg8[%c0_9, %c0_10] : memref<16x128xf32, #tpu.memory_space<vmem>>, vector<16x128xf32>
    %c0_11 = arith.constant 0 : index
    %c0_12 = arith.constant 0 : index
    %18 = vector.load %arg5[%c0_11, %c0_12] : memref<256x128xf32, #tpu.memory_space<vmem>>, vector<256x128xf32>
    %cst_13 = arith.constant dense<0.000000e+00> : vector<16x128xf32>
    %19 = tpu.matmul %16, %18, %cst_13 {dimension_numbers = #tpu.dot_dimension_numbers<[1], [0], [0], [1], [0, 0, 1, 1], [], []>} : vector<16x256xf32>, vector<256x128xf32>, vector<16x128xf32> -> vector<16x128xf32>
    %20 = arith.addf %17, %19 : vector<16x128xf32>
    %c0_14 = arith.constant 0 : index
    %c0_15 = arith.constant 0 : index
    %21 = vector.load %arg8[%c0_14, %c0_15] : memref<16x128xf32, #tpu.memory_space<vmem>>, vector<16x128xf32>
    tpu.vector_store %arg8[%c0_14, %c0_15], %20 {strides = array<i32>} : memref<16x128xf32, #tpu.memory_space<vmem>>, vector<16x128xf32>,
    %c0_i32_16 = arith.constant 0 : i32
    %22 = arith.cmpi eq, %arg1, %c0_i32_16 : i32
    %23 = arith.extui %22 : i1 to i32
    %c0_i32_17 = arith.constant 0 : i32
    %24 = arith.cmpi ne, %23, %c0_i32_17 : i32
    scf.if %24 {
      %c0_18 = arith.constant 0 : index
      %c0_19 = arith.constant 0 : index
      %25 = vector.load %arg8[%c0_18, %c0_19] : memref<16x128xf32, #tpu.memory_space<vmem>>, vector<16x128xf32>
      %c0_20 = arith.constant 0 : index
      %c0_21 = arith.constant 0 : index
      %26 = vector.load %arg6[%c0_20, %c0_21] : memref<1x128xf32, #tpu.memory_space<vmem>>, vector<1x128xf32>
      %27 = vector.broadcast %26 : vector<1x128xf32> to vector<16x128xf32>
      %28 = arith.addf %25, %27 : vector<16x128xf32>
      %c0_22 = arith.constant 0 : index
      %c0_23 = arith.constant 0 : index
      %29 = vector.load %arg7[%c0_22, %c0_23] : memref<16x128xf32, #tpu.memory_space<vmem>>, vector<16x128xf32>
      tpu.vector_store %arg7[%c0_22, %c0_23], %28 {strides = array<i32>} : memref<16x128xf32, #tpu.memory_space<vmem>>, vector<16x128xf32>,
    } else {
    }
    return
  }
  func.func @transform_0(%arg0: i32, %arg1: i32) -> (i32, i32) {
    %c0_i32 = arith.constant 0 : i32
    %c0_i32_0 = arith.constant 0 : i32
    return %arg0, %c0_i32 : i32, i32
  }
  func.func @transform_1(%arg0: i32, %arg1: i32) -> (i32, i32) {
    %c0_i32 = arith.constant 0 : i32
    %c0_i32_0 = arith.constant 0 : i32
    return %c0_i32, %arg1 : i32, i32
  }
  func.func @transform_2(%arg0: i32, %arg1: i32) -> (i32, i32) {
    %c0_i32 = arith.constant 0 : i32
    %c0_i32_0 = arith.constant 0 : i32
    return %c0_i32, %arg1 : i32, i32
  }
  func.func @transform_3(%arg0: i32, %arg1: i32) -> (i32, i32) {
    %c0_i32 = arith.constant 0 : i32
    %c0_i32_0 = arith.constant 0 : i32
    return %arg1, %c0_i32 : i32, i32
  }
  func.func @transform_4(%arg0: i32, %arg1: i32) -> (i32, i32) {
    %c0_i32 = arith.constant 0 : i32
    %c0_i32_0 = arith.constant 0 : i32
    %c0_i32_1 = arith.constant 0 : i32
    return %c0_i32, %c0_i32_0 : i32, i32
  }
  func.func @transform_5(%arg0: i32, %arg1: i32) -> (i32, i32) {
    %c0_i32 = arith.constant 0 : i32
    %c0_i32_0 = arith.constant 0 : i32
    return %arg0, %c0_i32 : i32, i32
  }
}

</mosaic_0001>

<llo_original>
// kernel: tpu_custom_call.1
$region0: #{tpu_custom_call.1}
  #allocation0 [shape = 'u32[]', space=smem, size = 0x4, offset = 0x4, fixed_abs, tag = 'smem constant byte address 0x4 - core index']
  #allocation1 [shape = 'u32[144,128]{1,0:T(1,128)}', space=vmem, size = 0x12000, scoped, tag = 'internal scratch']
  #allocation2 [shape = 'f32[16,128]{1,0:T(8,128)}', space=vmem, size = 0x2000, scoped, tag = 'scratch operand']
  %s0 = inlined_call_operand.hbm [shape: f32[16,128], index: 0, kind: input, shape index: {}]
  %s1 = inlined_call_operand.hbm [shape: f32[128,256], index: 1, kind: input, shape index: {}]
  %s2 = inlined_call_operand.vmem [shape: f32[1,256], index: 2, kind: input, shape index: {}]
  %s3 = inlined_call_operand.hbm [shape: f32[256,128], index: 3, kind: input, shape index: {}]
  %s4 = inlined_call_operand.vmem [shape: f32[1,128], index: 4, kind: input, shape index: {}]
  %s5 = inlined_call_operand.hbm [shape: f32[16,128], index: 5, kind: output, shape index: {}]
  %s6 = sld [smem:[#allocation0]]
  $region50: #{tpu_custom_call.1} parent=0
    _
  %s8 = ssub.s32 1, %s6
  %s9 = scalar_select 0, %s8, %s6
  $region1: #{tpu_custom_call.1} parent=0
    #allocation3 [shape = 'u8[8192]{0}', space=vmem, size = 0x2000, scoped, tag = 'input window, operand 0, single buffered']
    #allocation4 [shape = 's32[1]{0}', space=sflag, size = 0x4, scoped, tag = 'scoped memory for tpu_custom_call.1']
    #allocation5 [shape = 's32[1]{0}', space=sflag, size = 0x4, scoped, tag = 'scoped memory for tpu_custom_call.1']
    #allocation6 [shape = 'u8[131072]{0}', space=vmem, size = 0x20000, scoped, tag = 'input window, operand 1, single buffered']
    #allocation7 [shape = 's32[1]{0}', space=sflag, size = 0x4, scoped, tag = 'scoped memory for tpu_custom_call.1']
    #allocation8 [shape = 'u8[131072]{0}', space=vmem, size = 0x20000, scoped, tag = 'input window, operand 3, single buffered']
    #allocation9 [shape = 'u8[8192]{0}', space=vmem, size = 0x2000, scoped, tag = 'output window, operand 0, single buffered']
    %10 = vsyncpa [#allocation4], 0
    %11 = vsyncpa [#allocation7], 0
    %12 = vsyncpa [#allocation5], 0
    // Predicated region
    $region2: #{tpu_custom_call.1} parent=1 // pred_check
      _
    $region3: #{tpu_custom_call.1} parent=1 // pred_check_branch
      %14 = sbr.rel (0) target = $region5
    $region4: #{tpu_custom_call.1} parent=1 // pred_region
      %s16 = ssub.s32 256, 256
      %17 = vsyncadd [#allocation4], %s16
      %s18 = sshll.u32 [#allocation3], 4
      %s19 = int_to_ptr.vmem [resolvable:$true] %s18
      %24 = dma.hbm_to_vmem [thread:$0]  %s0, 256, %s19, [#allocation4], 128, 128, 8
    $region5: #{tpu_custom_call.1} parent=1 // pred_fallthru
      _
    // Predicated region
    $region6: #{tpu_custom_call.1} parent=1 // pred_check
      _
    $region7: #{tpu_custom_call.1} parent=1 // pred_check_branch
      %26 = sbr.rel (0) target = $region9
    $region8: #{tpu_custom_call.1} parent=1 // pred_region
      %s28 = ssub.s32 4096, 4096
      %29 = vsyncadd [#allocation7], %s28
      %s30 = sshll.u32 [#allocation6], 4
      %s31 = int_to_ptr.vmem [resolvable:$true] %s30
      %36 = dma.hbm_to_vmem [thread:$0]  %s1, 4096, %s31, [#allocation7], 256, 256, 16
    $region9: #{tpu_custom_call.1} parent=1 // pred_fallthru
      _
    // Predicated region
    $region10: #{tpu_custom_call.1} parent=1 // pred_check
      _
    $region11: #{tpu_custom_call.1} parent=1 // pred_check_branch
      %38 = sbr.rel (0) target = $region13
    $region12: #{tpu_custom_call.1} parent=1 // pred_region
      _
    $region13: #{tpu_custom_call.1} parent=1 // pred_fallthru
      _
    // Predicated region
    $region14: #{tpu_custom_call.1} parent=1 // pred_check
      _
    $region15: #{tpu_custom_call.1} parent=1 // pred_check_branch
      %40 = sbr.rel (0) target = $region17
    $region16: #{tpu_custom_call.1} parent=1 // pred_region
      %s42 = ssub.s32 4096, 4096
      %43 = vsyncadd [#allocation7], %s42
      %s44 = sshll.u32 [#allocation8], 4
      %s45 = int_to_ptr.vmem [resolvable:$true] %s44
      %50 = dma.hbm_to_vmem [thread:$0]  %s3, 4096, %s45, [#allocation7], 128, 128, 8
    $region17: #{tpu_custom_call.1} parent=1 // pred_fallthru
      _
    // Predicated region
    $region18: #{tpu_custom_call.1} parent=1 // pred_check
      _
    $region19: #{tpu_custom_call.1} parent=1 // pred_check_branch
      %52 = sbr.rel (0) target = $region21
    $region20: #{tpu_custom_call.1} parent=1 // pred_region
      _
    $region21: #{tpu_custom_call.1} parent=1 // pred_fallthru
      _
    // Predicated region
    $region22: #{tpu_custom_call.1} parent=1 // pred_check
      _
    $region23: #{tpu_custom_call.1} parent=1 // pred_check_branch
      %54 = sbr.rel (0) target = $region25
    $region24: #{tpu_custom_call.1} parent=1 // pred_region
      %55 = dma.done [#allocation4], 256
    $region25: #{tpu_custom_call.1} parent=1 // pred_fallthru
      _
    // Predicated region
    $region26: #{tpu_custom_call.1} parent=1 // pred_check
      _
    $region27: #{tpu_custom_call.1} parent=1 // pred_check_branch
      %57 = sbr.rel (0) target = $region29
    $region28: #{tpu_custom_call.1} parent=1 // pred_region
      %58 = dma.done [#allocation7], 4096
    $region29: #{tpu_custom_call.1} parent=1 // pred_fallthru
      _
    // Predicated region
    $region30: #{tpu_custom_call.1} parent=1 // pred_check
      _
    $region31: #{tpu_custom_call.1} parent=1 // pred_check_branch
      %60 = sbr.rel (0) target = $region33
    $region32: #{tpu_custom_call.1} parent=1 // pred_region
      %61 = dma.done [#allocation7], 4096
    $region33: #{tpu_custom_call.1} parent=1 // pred_fallthru
      _
    %p62 = scmp.eq.s32.totalorder 0, 0
    // Predicated region
    $region34: #{tpu_custom_call.1} parent=1 // pred_check
      %p63 = pneg %p62
    $region35: #{tpu_custom_call.1} parent=1 // pred_check_branch
      %65 = sbr.rel (%p63) target = $region37
    $region36: #{tpu_custom_call.1} parent=1 // pred_region
      %66 = vst [vmem:[#allocation2] sm:$0xff] 0.0
      %67 = vst [vmem:[#allocation2 + $0x8] sm:$0xff] 0.0
    $region37: #{tpu_custom_call.1} parent=1 // pred_fallthru
      _
    %v68 = vld [vmem:[#allocation3] sm:$0xff]
    %v69 = vld [vmem:[#allocation3 + $0x8] sm:$0xff]
    %v70 = vld [vmem:[#allocation6] sm:$0xff]
    %v71 = vld [vmem:[#allocation6 + $0x8] sm:$0xff]
    %v72 = vld [vmem:[#allocation6 + $0x10] sm:$0xff]
    %v73 = vld [vmem:[#allocation6 + $0x18] sm:$0xff]
    %v74 = vld [vmem:[#allocation6 + $0x20] sm:$0xff]
    %v75 = vld [vmem:[#allocation6 + $0x28] sm:$0xff]
    %v76 = vld [vmem:[#allocation6 + $0x30] sm:$0xff]
    %v77 = vld [vmem:[#allocation6 + $0x38] sm:$0xff]
    %v78 = vld [vmem:[#allocation6 + $0x40] sm:$0xff]
    %v79 = vld [vmem:[#allocation6 + $0x48] sm:$0xff]
    %v80 = vld [vmem:[#allocation6 + $0x50] sm:$0xff]
    %v81 = vld [vmem:[#allocation6 + $0x58] sm:$0xff]
    %v82 = vld [vmem:[#allocation6 + $0x60] sm:$0xff]
    %v83 = vld [vmem:[#allocation6 + $0x68] sm:$0xff]
    %v84 = vld [vmem:[#allocation6 + $0x70] sm:$0xff]
    %v85 = vld [vmem:[#allocation6 + $0x78] sm:$0xff]
    %v86 = vld [vmem:[#allocation6 + $0x80] sm:$0xff]
    %v87 = vld [vmem:[#allocation6 + $0x88] sm:$0xff]
    %v88 = vld [vmem:[#allocation6 + $0x90] sm:$0xff]
    %v89 = vld [vmem:[#allocation6 + $0x98] sm:$0xff]
    %v90 = vld [vmem:[#allocation6 + $0xa0] sm:$0xff]
    %v91 = vld [vmem:[#allocation6 + $0xa8] sm:$0xff]
    %v92 = vld [vmem:[#allocation6 + $0xb0] sm:$0xff]
    %v93 = vld [vmem:[#allocation6 + $0xb8] sm:$0xff]
    %v94 = vld [vmem:[#allocation6 + $0xc0] sm:$0xff]
    %v95 = vld [vmem:[#allocation6 + $0xc8] sm:$0xff]
    %v96 = vld [vmem:[#allocation6 + $0xd0] sm:$0xff]
    %v97 = vld [vmem:[#allocation6 + $0xd8] sm:$0xff]
    %v98 = vld [vmem:[#allocation6 + $0xe0] sm:$0xff]
    %v99 = vld [vmem:[#allocation6 + $0xe8] sm:$0xff]
    %v100 = vld [vmem:[#allocation6 + $0xf0] sm:$0xff]
    %v101 = vld [vmem:[#allocation6 + $0xf8] sm:$0xff]
    %v102 = vld [vmem:[%s2] sm:$0x3]
    %v104 = vlaneseq
    %v105 = vshrl.u32 %v104, 7
    %v106 = vsub.s32 0, %v105
    %v107 = vrot.slane %v102, %v106
    %v108 = vlaneseq
    %v109 = vshrl.u32 %v108, 7
    %v110 = vsub.s32 1, %v109
    %v111 = vrot.slane %v102, %v110
    %114 = vmatprep.subr.mxu0 %v71
    %115 = vmatpush1.msra.mxu0 %v70
    %116 = vmatprep.subr.mxu0 %v73
    %117 = vmatpush1.msra.mxu0 %v72
    %118 = vmatprep.subr.mxu0 %v75
    %119 = vmatpush1.msra.mxu0 %v74
    %120 = vmatprep.subr.mxu0 %v77
    %121 = vmatpush1.msra.mxu0 %v76
    %122 = vmatprep.subr.mxu0 %v79
    %123 = vmatpush1.msra.mxu0 %v78
    %124 = vmatprep.subr.mxu0 %v81
    %125 = vmatpush1.msra.mxu0 %v80
    %126 = vmatprep.subr.mxu0 %v83
    %127 = vmatpush1.msra.mxu0 %v82
    %128 = vmatprep.subr.mxu0 %v85
    %129 = vmatpush1.msra.mxu0 %v84
    %130 = vmatprep.subr.mxu0 %v87
    %131 = vmatpush1.msra.mxu0 %v86
    %132 = vmatprep.subr.mxu0 %v89
    %133 = vmatpush1.msra.mxu0 %v88
    %134 = vmatprep.subr.mxu0 %v91
    %135 = vmatpush1.msra.mxu0 %v90
    %136 = vmatprep.subr.mxu0 %v93
    %137 = vmatpush1.msra.mxu0 %v92
    %138 = vmatprep.subr.mxu0 %v95
    %139 = vmatpush1.msra.mxu0 %v94
    %140 = vmatprep.subr.mxu0 %v97
    %141 = vmatpush1.msra.mxu0 %v96
    %142 = vmatprep.subr.mxu0 %v99
    %143 = vmatpush1.msra.mxu0 %v98
    %144 = vmatprep.subr.mxu0 %v101
    %145 = vmatpush1.msra.mxu0 %v100
    %146 = vmatprep.subr.mxu0 0.0
    %147 = vmatpush1.msra.mxu0 0.0
    %148 = vmatprep.subr.mxu0 0.0
    %149 = vmatpush1.msra.mxu0 0.0
    %150 = vmatprep.subr.mxu0 0.0
    %151 = vmatpush1.msra.mxu0 0.0
    %152 = vmatprep.subr.mxu0 0.0
    %153 = vmatpush1.msra.mxu0 0.0
    %154 = vmatprep.subr.mxu0 0.0
    %155 = vmatpush1.msra.mxu0 0.0
    %156 = vmatprep.subr.mxu0 0.0
    %157 = vmatpush1.msra.mxu0 0.0
    %158 = vmatprep.subr.mxu0 0.0
    %159 = vmatpush1.msra.mxu0 0.0
    %160 = vmatprep.subr.mxu0 0.0
    %161 = vmatpush1.msra.mxu0 0.0
    %162 = vmatprep.subr.mxu0 0.0
    %163 = vmatpush1.msra.mxu0 0.0
    %164 = vmatprep.subr.mxu0 0.0
    %165 = vmatpush1.msra.mxu0 0.0
    %166 = vmatprep.subr.mxu0 0.0
    %167 = vmatpush1.msra.mxu0 0.0
    %168 = vmatprep.subr.mxu0 0.0
    %169 = vmatpush1.msra.mxu0 0.0
    %170 = vmatprep.subr.mxu0 0.0
    %171 = vmatpush1.msra.mxu0 0.0
    %172 = vmatprep.subr.mxu0 0.0
    %173 = vmatpush1.msra.mxu0 0.0
    %174 = vmatprep.subr.mxu0 0.0
    %175 = vmatpush1.msra.mxu0 0.0
    %176 = vmatprep.subr.mxu0 0.0
    %177 = vmatpush1.msra.mxu0 0.0
    %178 = vmatprep.mubr.f32.mxu0 0.0
    %179 = vmatmul.mubr.f32.gmra.mrb[0].mxu0 %v68
    %v180 = vpop.f32.mrb[0].mxu0
    %v181 = vadd.f32 %v107, %v180
    %v182 = vpop.f32.mrb[0].mxu0
    %v183 = vadd.f32 %v111, %v182
    %184 = vmatprep.mubr.f32.mxu0 0.0
    %185 = vmatmul.mubr.f32.gmra.mrb[0].mxu0 %v69
    %v186 = vpop.f32.mrb[0].mxu0
    %v187 = vadd.f32 %v107, %v186
    %v188 = vpop.f32.mrb[0].mxu0
    %v189 = vadd.f32 %v111, %v188
    %190 = vdwg.mxu0
    %v191 = vmul.f32 %v181, 0.5
    %v192 = vmul.f32 %v183, 0.5
    %v193 = vmul.f32 %v187, 0.5
    %v194 = vmul.f32 %v189, 0.5
    %v195 = vmul.f32 %v181, 0.70710677
    %v196 = vmul.f32 %v183, 0.70710677
    %v197 = vmul.f32 %v187, 0.70710677
    %v198 = vmul.f32 %v189, 0.70710677
    %v199 = verf.f32.pop %v195
    %v200 = verf.f32.pop %v196
    %v201 = verf.f32.pop %v197
    %v202 = verf.f32.pop %v198
    %v203 = vadd.f32 %v199, 1.0
    %v204 = vadd.f32 %v200, 1.0
    %v205 = vadd.f32 %v201, 1.0
    %v206 = vadd.f32 %v202, 1.0
    %v207 = vmul.f32 %v191, %v203
    %v208 = vmul.f32 %v192, %v204
    %v209 = vmul.f32 %v193, %v205
    %v210 = vmul.f32 %v194, %v206
    %v211 = vld [vmem:[#allocation2] sm:$0xff]
    %v212 = vld [vmem:[#allocation2 + $0x8] sm:$0xff]
    %v213 = vld [vmem:[#allocation8] sm:$0xff]
    %v214 = vld [vmem:[#allocation8 + $0x8] sm:$0xff]
    %v215 = vld [vmem:[#allocation8 + $0x10] sm:$0xff]
    %v216 = vld [vmem:[#allocation8 + $0x18] sm:$0xff]
    %v217 = vld [vmem:[#allocation8 + $0x20] sm:$0xff]
    %v218 = vld [vmem:[#allocation8 + $0x28] sm:$0xff]
    %v219 = vld [vmem:[#allocation8 + $0x30] sm:$0xff]
    %v220 = vld [vmem:[#allocation8 + $0x38] sm:$0xff]
    %v221 = vld [vmem:[#allocation8 + $0x40] sm:$0xff]
    %v222 = vld [vmem:[#allocation8 + $0x48] sm:$0xff]
    %v223 = vld [vmem:[#allocation8 + $0x50] sm:$0xff]
    %v224 = vld [vmem:[#allocation8 + $0x58] sm:$0xff]
    %v225 = vld [vmem:[#allocation8 + $0x60] sm:$0xff]
    %v226 = vld [vmem:[#allocation8 + $0x68] sm:$0xff]
    %v227 = vld [vmem:[#allocation8 + $0x70] sm:$0xff]
    %v228 = vld [vmem:[#allocation8 + $0x78] sm:$0xff]
    %v229 = vld [vmem:[#allocation8 + $0x80] sm:$0xff]
    %v230 = vld [vmem:[#allocation8 + $0x88] sm:$0xff]
    %v231 = vld [vmem:[#allocation8 + $0x90] sm:$0xff]
    %v232 = vld [vmem:[#allocation8 + $0x98] sm:$0xff]
    %v233 = vld [vmem:[#allocation8 + $0xa0] sm:$0xff]
    %v234 = vld [vmem:[#allocation8 + $0xa8] sm:$0xff]
    %v235 = vld [vmem:[#allocation8 + $0xb0] sm:$0xff]
    %v236 = vld [vmem:[#allocation8 + $0xb8] sm:$0xff]
    %v237 = vld [vmem:[#allocation8 + $0xc0] sm:$0xff]
    %v238 = vld [vmem:[#allocation8 + $0xc8] sm:$0xff]
    %v239 = vld [vmem:[#allocation8 + $0xd0] sm:$0xff]
    %v240 = vld [vmem:[#allocation8 + $0xd8] sm:$0xff]
    %v241 = vld [vmem:[#allocation8 + $0xe0] sm:$0xff]
    %v242 = vld [vmem:[#allocation8 + $0xe8] sm:$0xff]
    %v243 = vld [vmem:[#allocation8 + $0xf0] sm:$0xff]
    %v244 = vld [vmem:[#allocation8 + $0xf8] sm:$0xff]
    %245 = vmatprep.subr.mxu0 0.0
    %246 = vmatpush1.msra.mxu0 %v213
    %247 = vmatprep.subr.mxu0 0.0
    %248 = vmatpush1.msra.mxu0 %v214
    %249 = vmatprep.subr.mxu0 0.0
    %250 = vmatpush1.msra.mxu0 %v215
    %251 = vmatprep.subr.mxu0 0.0
    %252 = vmatpush1.msra.mxu0 %v216
    %253 = vmatprep.subr.mxu0 0.0
    %254 = vmatpush1.msra.mxu0 %v217
    %255 = vmatprep.subr.mxu0 0.0
    %256 = vmatpush1.msra.mxu0 %v218
    %257 = vmatprep.subr.mxu0 0.0
    %258 = vmatpush1.msra.mxu0 %v219
    %259 = vmatprep.subr.mxu0 0.0
    %260 = vmatpush1.msra.mxu0 %v220
    %261 = vmatprep.subr.mxu0 0.0
    %262 = vmatpush1.msra.mxu0 %v221
    %263 = vmatprep.subr.mxu0 0.0
    %264 = vmatpush1.msra.mxu0 %v222
    %265 = vmatprep.subr.mxu0 0.0
    %266 = vmatpush1.msra.mxu0 %v223
    %267 = vmatprep.subr.mxu0 0.0
    %268 = vmatpush1.msra.mxu0 %v224
    %269 = vmatprep.subr.mxu0 0.0
    %270 = vmatpush1.msra.mxu0 %v225
    %271 = vmatprep.subr.mxu0 0.0
    %272 = vmatpush1.msra.mxu0 %v226
    %273 = vmatprep.subr.mxu0 0.0
    %274 = vmatpush1.msra.mxu0 %v227
    %275 = vmatprep.subr.mxu0 0.0
    %276 = vmatpush1.msra.mxu0 %v228
    %277 = vmatprep.subr.mxu0 0.0
    %278 = vmatpush1.msra.mxu0 %v229
    %279 = vmatprep.subr.mxu0 0.0
    %280 = vmatpush1.msra.mxu0 %v230
    %281 = vmatprep.subr.mxu0 0.0
    %282 = vmatpush1.msra.mxu0 %v231
    %283 = vmatprep.subr.mxu0 0.0
    %284 = vmatpush1.msra.mxu0 %v232
    %285 = vmatprep.subr.mxu0 0.0
    %286 = vmatpush1.msra.mxu0 %v233
    %287 = vmatprep.subr.mxu0 0.0
    %288 = vmatpush1.msra.mxu0 %v234
    %289 = vmatprep.subr.mxu0 0.0
    %290 = vmatpush1.msra.mxu0 %v235
    %291 = vmatprep.subr.mxu0 0.0
    %292 = vmatpush1.msra.mxu0 %v236
    %293 = vmatprep.subr.mxu0 0.0
    %294 = vmatpush1.msra.mxu0 %v237
    %295 = vmatprep.subr.mxu0 0.0
    %296 = vmatpush1.msra.mxu0 %v238
    %297 = vmatprep.subr.mxu0 0.0
    %298 = vmatpush1.msra.mxu0 %v239
    %299 = vmatprep.subr.mxu0 0.0
    %300 = vmatpush1.msra.mxu0 %v240
    %301 = vmatprep.subr.mxu0 0.0
    %302 = vmatpush1.msra.mxu0 %v241
    %303 = vmatprep.subr.mxu0 0.0
    %304 = vmatpush1.msra.mxu0 %v242
    %305 = vmatprep.subr.mxu0 0.0
    %306 = vmatpush1.msra.mxu0 %v243
    %307 = vmatprep.subr.mxu0 0.0
    %308 = vmatpush1.msra.mxu0 %v244
    %309 = vmatprep.mubr.f32.mxu0 %v208
    %310 = vmatmul.mubr.f32.gmra.mrb[0].mxu0 %v207
    %v311 = vpop.f32.mrb[0].mxu0
    %v312 = vadd.f32 0.0, %v311
    %v313 = vpop.f32.mrb[0].mxu0
    %314 = vmatprep.mubr.f32.mxu0 %v210
    %315 = vmatmul.mubr.f32.gmra.mrb[0].mxu0 %v209
    %v316 = vpop.f32.mrb[0].mxu0
    %v317 = vadd.f32 0.0, %v316
    %v318 = vpop.f32.mrb[0].mxu0
    %319 = vdwg.mxu0
    %v320 = vadd.f32 %v211, %v312
    %v321 = vadd.f32 %v212, %v317
    %322 = vst [vmem:[#allocation2] sm:$0xff] %v320
    %323 = vst [vmem:[#allocation2 + $0x8] sm:$0xff] %v321
    // Predicated region
    $region38: #{tpu_custom_call.1} parent=1 // pred_check
      %p324 = pneg %p62
    $region39: #{tpu_custom_call.1} parent=1 // pred_check_branch
      %326 = sbr.rel (%p324) target = $region41
    $region40: #{tpu_custom_call.1} parent=1 // pred_region
      %v327 = vld [vmem:[#allocation2] sm:$0xff]
      %v328 = vld [vmem:[#allocation2 + $0x8] sm:$0xff]
      %v329 = vld [vmem:[%s4] sm:$0x1]
      %v331 = vlaneseq
      %v332 = vshrl.u32 %v331, 7
      %v333 = vsub.s32 0, %v332
      %v334 = vrot.slane %v329, %v333
      %v336 = vadd.f32 %v327, %v334
      %v337 = vadd.f32 %v328, %v334
      %338 = vst [vmem:[#allocation9] sm:$0xff] %v336
      %339 = vst [vmem:[#allocation9 + $0x8] sm:$0xff] %v337
    $region41: #{tpu_custom_call.1} parent=1 // pred_fallthru
      _
    // Predicated region
    $region42: #{tpu_custom_call.1} parent=1 // pred_check
      _
    $region43: #{tpu_custom_call.1} parent=1 // pred_check_branch
      %341 = sbr.rel (0) target = $region45
    $region44: #{tpu_custom_call.1} parent=1 // pred_region
      %s343 = ssub.s32 256, 256
      %344 = vsyncadd [#allocation5], %s343
      %s345 = sshll.u32 [#allocation9], 4
      %s346 = int_to_ptr.vmem [resolvable:$true] %s345
      %351 = dma.vmem_to_hbm [thread:$0]  %s346, 256, %s5, [#allocation5], 128, 128, 8
    $region45: #{tpu_custom_call.1} parent=1 // pred_fallthru
      _
    // Predicated region
    $region46: #{tpu_custom_call.1} parent=1 // pred_check
      _
    $region47: #{tpu_custom_call.1} parent=1 // pred_check_branch
      %353 = sbr.rel (0) target = $region49
    $region48: #{tpu_custom_call.1} parent=1 // pred_region
      %354 = dma.done [#allocation5], 256
    $region49: #{tpu_custom_call.1} parent=1 // pred_fallthru
      _
    %355 = vsyncpa [#allocation4], 1
    %356 = vsyncpa [#allocation7], 1
    %357 = vsyncpa [#allocation5], 1

</llo_original>
